<compile_context>
chip_gen: v7x
topology: tpu7x:2x2x1
jax: 0.10.0
libtpu: 0.0.40
codegen_flags: <defaults>
</compile_context>

<pallas_src>
import jax
import jax.numpy as jnp
from jax.experimental import pallas as pl
from jax.experimental.pallas import tpu as pltpu


def _interp_matrix(out_size: int, in_size: int, scale: float) -> jnp.ndarray:
    """Row-stochastic bilinear interpolation matrix (PyTorch align_corners=False)."""
    dst = jnp.arange(out_size, dtype=jnp.float32)
    src = (dst + 0.5) / scale - 0.5
    src = jnp.maximum(src, 0.0)                       # PyTorch clamps negative coords
    x0 = jnp.floor(src).astype(jnp.int32)
    lam = src - x0.astype(jnp.float32)
    x0 = jnp.minimum(x0, in_size - 1)
    x1 = jnp.minimum(x0 + 1, in_size - 1)
    rows = jnp.arange(out_size)
    wmat = jnp.zeros((out_size, in_size), dtype=jnp.float32)
    wmat = wmat.at[rows, x0].add(1.0 - lam)
    wmat = wmat.at[rows, x1].add(lam)
    return wmat


def _upsample_kernel(x_ref, wh_ref, wwt_ref, o_ref, y_ref):
    # x_ref:   (B, H, W)          input planes for this grid step
    # wh_ref:  (H_out, H)   f32   H-interpolation matrix (resident)
    # wwt_ref: (W, W_out)   f32   W-interpolation matrix, pre-transposed (resident)
    # o_ref:   (B, H_out, W_out)  output planes
    # y_ref:   (B, H, W_out) f32  scratch holding the W-pass result
    b, h, w = x_ref.shape
    w_out = wwt_ref.shape[1]

    # ---- W-pass: one flat MXU matmul over the whole plane batch ----------
    # Merging the leading dims keeps the lane dim (W) untouched.
    xf = x_ref[...].astype(jnp.float32).reshape(b * h, w)
    y = jnp.dot(xf, wwt_ref[...], preferred_element_type=jnp.float32)  # (B*H, W_out)
    y_ref[...] = y.reshape(b, h, w_out)

    # ---- H-pass: per-plane 2-D matmul reusing the resident W_h (no broadcast)
    wh = wh_ref[...]                                                   # (H_out, H) f32

    def h_pass(i, carry):
        oi = jnp.dot(wh, y_ref[i], preferred_element_type=jnp.float32)  # (H_out, W_out)
        o_ref[i] = oi.astype(o_ref.dtype)
        return carry

    jax.lax.fori_loop(0, b, h_pass, 0, unroll=(b <= 16))


def _round_up(v: int, m: int) -> int:
    return ((v + m - 1) // m) * m


def _padded_bytes(rows: int, cols: int, itemsize: int) -> int:
    # VMEM tiles the minor two dims to (8, 128) (sublane x lane).
    return _round_up(rows, 8) * _round_up(cols, 128) * itemsize


def _vmem_plan():
    cap = 64 * 1024 * 1024  # conservative default (v7x per-TensorCore VMEM)
    try:
        info = pltpu.get_tpu_info()
        cap = int(getattr(info, "vmem_capacity_bytes", cap)) or cap
    except Exception:
        pass
    vmem_limit = max(16 * 1024 * 1024, int(cap * 0.70))
    vmem_budget = vmem_limit // 2
    # ~6 MiB output blocks on 128 MiB chips (v5e/v6e: fewer grid steps, longer
    # contiguous DMAs), ~3 MiB on 64 MiB chips (v7x).
    target_out_bytes = (6 if cap >= 96 * 1024 * 1024 else 3) * 1024 * 1024
    return vmem_limit, vmem_budget, target_out_bytes


def _pick_plane_batch(p, h, w, h_out, w_out, itemsize, vmem_budget, target_out_bytes):
    per_plane = (
        2 * _padded_bytes(h, w, itemsize)            # double-buffered input block
        + 2 * _padded_bytes(h_out, w_out, itemsize)  # double-buffered output block
        + _padded_bytes(h, w, 4)                     # f32 copy of the input block
        + _padded_bytes(h, w_out, 4)                 # f32 W-pass scratch
    )
    fixed = (
        2 * _padded_bytes(h_out, h, 4)               # W_h (double-buffered, resident)
        + 2 * _padded_bytes(w, w_out, 4)             # W_w^T (double-buffered, resident)
        + _padded_bytes(h_out, w_out, 4)             # one live f32 output plane
    )
    avail = max(vmem_budget - fixed, per_plane)
    b_fit = max(1, avail // per_plane)
    b_tgt = max(1, target_out_bytes // max(1, h_out * w_out * itemsize))
    b = min(b_fit, b_tgt)
    # Keep at least two grid steps so chips with 2 TensorCores (v7x) can split
    # the ("parallel",) grid; costs only one ~0.35us extra step on 1-TC chips.
    if p >= 2:
        b = min(b, pl.cdiv(p, 2))
    b = max(1, min(b, p))
    return int(b)


def upsample_bilinear(x: jnp.ndarray, scale: int = 2) -> jnp.ndarray:
    """x: (N, C, H, W) -> (N, C, H*scale, W*scale), PyTorch bilinear (align_corners=False)."""
    n, c, h, w = x.shape
    h_out, w_out = h * scale, w * scale
    p = n * c
    itemsize = x.dtype.itemsize

    # Interpolation matrices stay f32 (exact for scale=2; parity for other scales).
    wh = _interp_matrix(h_out, h, float(scale))            # (H_out, H)  f32
    wwt = _interp_matrix(w_out, w, float(scale)).T         # (W, W_out)  f32, pre-transposed

    x_flat = x.reshape(p, h, w)

    vmem_limit, vmem_budget, target_out_bytes = _vmem_plan()
    b = _pick_plane_batch(p, h, w, h_out, w_out, itemsize, vmem_budget, target_out_bytes)
    grid = pl.cdiv(p, b)

    cost = pl.CostEstimate(
        flops=2 * p * h * w_out * (w + h_out),
        transcendentals=0,
        bytes_accessed=(p * h * w + p * h_out * w_out) * itemsize
        + (h_out * h + w * w_out) * 4,
    )

    out_flat = pl.pallas_call(
        _upsample_kernel,
        out_shape=jax.ShapeDtypeStruct((p, h_out, w_out), x.dtype),
        grid_spec=pltpu.PrefetchScalarGridSpec(
            num_scalar_prefetch=0,
            grid=(grid,),
            in_specs=[
                pl.BlockSpec((b, h, w), lambda i: (i, 0, 0)),     # B input planes
                pl.BlockSpec((h_out, h), lambda i: (0, 0)),       # W_h   (resident)
                pl.BlockSpec((w, w_out), lambda i: (0, 0)),       # W_w^T (resident)
            ],
            out_specs=pl.BlockSpec((b, h_out, w_out), lambda i: (i, 0, 0)),
            scratch_shapes=[pltpu.VMEM((b, h, w_out), jnp.float32)],
        ),
        compiler_params=pltpu.CompilerParams(
            dimension_semantics=("parallel",),
            vmem_limit_bytes=vmem_limit,
        ),
        cost_estimate=cost,
    )(x_flat, wh, wwt)

    return out_flat.reshape(n, c, h_out, w_out)


if __name__ == "__main__":
    def ref_upsample(xx, scale=2):
        _, _, hh, ww_ = xx.shape
        wh_r = _interp_matrix(hh * scale, hh, float(scale))
        ww_r = _interp_matrix(ww_ * scale, ww_, float(scale))
        return jnp.einsum('oh,nchw,pw->ncop', wh_r, xx, ww_r)

    key = jax.random.PRNGKey(0)
    x = jax.random.normal(key, (2, 4, 16, 16), dtype=jnp.float32)
    out = jax.block_until_ready(upsample_bilinear(x, scale=2))
    assert out.shape == (2, 4, 32, 32)
    assert jnp.allclose(out, ref_upsample(x), atol=1e-5, rtol=1e-5)

    # Ragged plane count (p % b != 0) to exercise the masked last grid block.
    x2 = jax.random.normal(jax.random.PRNGKey(1), (1, 3, 16, 16), dtype=jnp.float32)
    out2 = jax.block_until_ready(upsample_bilinear(x2, scale=2))
    assert out2.shape == (1, 3, 32, 32)
    assert jnp.allclose(out2, ref_upsample(x2), atol=1e-5, rtol=1e-5)

    print("KERNEL_OK")
</pallas_src>

<mosaic_0001>
module attributes {stable_mosaic.version = 11 : i64} {
  func.func @_upsample_kernel(%arg0: i32, %arg1: memref<4x16x16xf32, #tpu.memory_space<vmem>>, %arg2: memref<32x16xf32, #tpu.memory_space<vmem>>, %arg3: memref<16x32xf32, #tpu.memory_space<vmem>>, %arg4: memref<4x32x32xf32, #tpu.memory_space<vmem>>, %arg5: memref<4x16x32xf32, #tpu.memory_space<vmem>>) attributes {dimension_semantics = [#tpu.dimension_semantics<parallel>], iteration_bounds = array<i64: 2>, scalar_prefetch = 0 : i64, scratch_operands = 1 : i64, tpu.core_type = #tpu.core_type<tc>, window_params = [{transform_indices = @transform_0, window_bounds = array<i64: 4, 16, 16>}, {pipeline_mode = #tpu.pipeline_mode<synchronous>, transform_indices = @transform_1, window_bounds = array<i64: 32, 16>}, {pipeline_mode = #tpu.pipeline_mode<synchronous>, transform_indices = @transform_2, window_bounds = array<i64: 16, 32>}, {transform_indices = @transform_3, window_bounds = array<i64: 4, 32, 32>}]} {
    %c0 = arith.constant 0 : index
    %c0_0 = arith.constant 0 : index
    %c0_1 = arith.constant 0 : index
    %0 = vector.load %arg1[%c0, %c0_0, %c0_1] : memref<4x16x16xf32, #tpu.memory_space<vmem>>, vector<4x16x16xf32>
    %1 = vector.shape_cast %0 : vector<4x16x16xf32> to vector<64x16xf32>
    %c0_2 = arith.constant 0 : index
    %c0_3 = arith.constant 0 : index
    %2 = vector.load %arg3[%c0_2, %c0_3] : memref<16x32xf32, #tpu.memory_space<vmem>>, vector<16x32xf32>
    %cst = arith.constant dense<0.000000e+00> : vector<64x32xf32>
    %3 = tpu.matmul %1, %2, %cst {dimension_numbers = #tpu.dot_dimension_numbers<[1], [0], [0], [1], [0, 0, 1, 1], [], []>} : vector<64x16xf32>, vector<16x32xf32>, vector<64x32xf32> -> vector<64x32xf32>
    %4 = vector.shape_cast %3 : vector<64x32xf32> to vector<4x16x32xf32>
    %c0_4 = arith.constant 0 : index
    %c0_5 = arith.constant 0 : index
    %c0_6 = arith.constant 0 : index
    %5 = vector.load %arg5[%c0_4, %c0_5, %c0_6] : memref<4x16x32xf32, #tpu.memory_space<vmem>>, vector<4x16x32xf32>
    tpu.vector_store %arg5[%c0_4, %c0_5, %c0_6], %4 {strides = array<i32>} : memref<4x16x32xf32, #tpu.memory_space<vmem>>, vector<4x16x32xf32>,
    %c0_7 = arith.constant 0 : index
    %c0_8 = arith.constant 0 : index
    %6 = vector.load %arg2[%c0_7, %c0_8] : memref<32x16xf32, #tpu.memory_space<vmem>>, vector<32x16xf32>
    %c0_i32 = arith.constant 0 : i32
    %7 = arith.index_cast %c0_i32 : i32 to index
    %c0_9 = arith.constant 0 : index
    %c0_10 = arith.constant 0 : index
    %8 = vector.load %arg5[%7, %c0_9, %c0_10] : memref<4x16x32xf32, #tpu.memory_space<vmem>>, vector<1x16x32xf32>
    %9 = vector.shape_cast %8 : vector<1x16x32xf32> to vector<16x32xf32>
    %cst_11 = arith.constant dense<0.000000e+00> : vector<32x32xf32>
    %10 = tpu.matmul %6, %9, %cst_11 {dimension_numbers = #tpu.dot_dimension_numbers<[1], [0], [0], [1], [0, 0, 1, 1], [], []>} : vector<32x16xf32>, vector<16x32xf32>, vector<32x32xf32> -> vector<32x32xf32>
    %11 = arith.index_cast %c0_i32 : i32 to index
    %c0_12 = arith.constant 0 : index
    %c0_13 = arith.constant 0 : index
    %12 = vector.load %arg4[%11, %c0_12, %c0_13] : memref<4x32x32xf32, #tpu.memory_space<vmem>>, vector<1x32x32xf32>
    %13 = vector.shape_cast %12 : vector<1x32x32xf32> to vector<32x32xf32>
    %14 = vector.shape_cast %10 : vector<32x32xf32> to vector<1x32x32xf32>
    tpu.vector_store %arg4[%11, %c0_12, %c0_13], %14 {strides = array<i32>} : memref<4x32x32xf32, #tpu.memory_space<vmem>>, vector<1x32x32xf32>,
    %c1_i32 = arith.constant 1 : i32
    %15 = arith.index_cast %c1_i32 : i32 to index
    %c0_14 = arith.constant 0 : index
    %c0_15 = arith.constant 0 : index
    %16 = vector.load %arg5[%15, %c0_14, %c0_15] : memref<4x16x32xf32, #tpu.memory_space<vmem>>, vector<1x16x32xf32>
    %17 = vector.shape_cast %16 : vector<1x16x32xf32> to vector<16x32xf32>
    %cst_16 = arith.constant dense<0.000000e+00> : vector<32x32xf32>
    %18 = tpu.matmul %6, %17, %cst_16 {dimension_numbers = #tpu.dot_dimension_numbers<[1], [0], [0], [1], [0, 0, 1, 1], [], []>} : vector<32x16xf32>, vector<16x32xf32>, vector<32x32xf32> -> vector<32x32xf32>
    %19 = arith.index_cast %c1_i32 : i32 to index
    %c0_17 = arith.constant 0 : index
    %c0_18 = arith.constant 0 : index
    %20 = vector.load %arg4[%19, %c0_17, %c0_18] : memref<4x32x32xf32, #tpu.memory_space<vmem>>, vector<1x32x32xf32>
    %21 = vector.shape_cast %20 : vector<1x32x32xf32> to vector<32x32xf32>
    %22 = vector.shape_cast %18 : vector<32x32xf32> to vector<1x32x32xf32>
    tpu.vector_store %arg4[%19, %c0_17, %c0_18], %22 {strides = array<i32>} : memref<4x32x32xf32, #tpu.memory_space<vmem>>, vector<1x32x32xf32>,
    %c2_i32 = arith.constant 2 : i32
    %23 = arith.index_cast %c2_i32 : i32 to index
    %c0_19 = arith.constant 0 : index
    %c0_20 = arith.constant 0 : index
    %24 = vector.load %arg5[%23, %c0_19, %c0_20] : memref<4x16x32xf32, #tpu.memory_space<vmem>>, vector<1x16x32xf32>
    %25 = vector.shape_cast %24 : vector<1x16x32xf32> to vector<16x32xf32>
    %cst_21 = arith.constant dense<0.000000e+00> : vector<32x32xf32>
    %26 = tpu.matmul %6, %25, %cst_21 {dimension_numbers = #tpu.dot_dimension_numbers<[1], [0], [0], [1], [0, 0, 1, 1], [], []>} : vector<32x16xf32>, vector<16x32xf32>, vector<32x32xf32> -> vector<32x32xf32>
    %27 = arith.index_cast %c2_i32 : i32 to index
    %c0_22 = arith.constant 0 : index
    %c0_23 = arith.constant 0 : index
    %28 = vector.load %arg4[%27, %c0_22, %c0_23] : memref<4x32x32xf32, #tpu.memory_space<vmem>>, vector<1x32x32xf32>
    %29 = vector.shape_cast %28 : vector<1x32x32xf32> to vector<32x32xf32>
    %30 = vector.shape_cast %26 : vector<32x32xf32> to vector<1x32x32xf32>
    tpu.vector_store %arg4[%27, %c0_22, %c0_23], %30 {strides = array<i32>} : memref<4x32x32xf32, #tpu.memory_space<vmem>>, vector<1x32x32xf32>,
    %c3_i32 = arith.constant 3 : i32
    %31 = arith.index_cast %c3_i32 : i32 to index
    %c0_24 = arith.constant 0 : index
    %c0_25 = arith.constant 0 : index
    %32 = vector.load %arg5[%31, %c0_24, %c0_25] : memref<4x16x32xf32, #tpu.memory_space<vmem>>, vector<1x16x32xf32>
    %33 = vector.shape_cast %32 : vector<1x16x32xf32> to vector<16x32xf32>
    %cst_26 = arith.constant dense<0.000000e+00> : vector<32x32xf32>
    %34 = tpu.matmul %6, %33, %cst_26 {dimension_numbers = #tpu.dot_dimension_numbers<[1], [0], [0], [1], [0, 0, 1, 1], [], []>} : vector<32x16xf32>, vector<16x32xf32>, vector<32x32xf32> -> vector<32x32xf32>
    %35 = arith.index_cast %c3_i32 : i32 to index
    %c0_27 = arith.constant 0 : index
    %c0_28 = arith.constant 0 : index
    %36 = vector.load %arg4[%35, %c0_27, %c0_28] : memref<4x32x32xf32, #tpu.memory_space<vmem>>, vector<1x32x32xf32>
    %37 = vector.shape_cast %36 : vector<1x32x32xf32> to vector<32x32xf32>
    %38 = vector.shape_cast %34 : vector<32x32xf32> to vector<1x32x32xf32>
    tpu.vector_store %arg4[%35, %c0_27, %c0_28], %38 {strides = array<i32>} : memref<4x32x32xf32, #tpu.memory_space<vmem>>, vector<1x32x32xf32>,
    %c4_i32 = arith.constant 4 : i32
    return
  }
  func.func @transform_0(%arg0: i32) -> (i32, i32, i32) {
    %c0_i32 = arith.constant 0 : i32
    %c0_i32_0 = arith.constant 0 : i32
    %c0_i32_1 = arith.constant 0 : i32
    return %arg0, %c0_i32, %c0_i32_0 : i32, i32, i32
  }
  func.func @transform_1(%arg0: i32) -> (i32, i32) {
    %c0_i32 = arith.constant 0 : i32
    %c0_i32_0 = arith.constant 0 : i32
    %c0_i32_1 = arith.constant 0 : i32
    return %c0_i32, %c0_i32_0 : i32, i32
  }
  func.func @transform_2(%arg0: i32) -> (i32, i32) {
    %c0_i32 = arith.constant 0 : i32
    %c0_i32_0 = arith.constant 0 : i32
    %c0_i32_1 = arith.constant 0 : i32
    return %c0_i32, %c0_i32_0 : i32, i32
  }
  func.func @transform_3(%arg0: i32) -> (i32, i32, i32) {
    %c0_i32 = arith.constant 0 : i32
    %c0_i32_0 = arith.constant 0 : i32
    %c0_i32_1 = arith.constant 0 : i32
    return %arg0, %c0_i32, %c0_i32_0 : i32, i32, i32
  }
}

</mosaic_0001>

<llo_original>
// kernel: tpu_custom_call.1
$region0: #{tpu_custom_call.1}
  #allocation0 [shape = 'u32[]', space=smem, size = 0x4, offset = 0x4, fixed_abs, tag = 'smem constant byte address 0x4 - core index']
  #allocation1 [shape = 'u32[144,128]{1,0:T(1,128)}', space=vmem, size = 0x12000, scoped, tag = 'internal scratch']
  #allocation2 [shape = 'f32[4,16,32]{2,1,0:T(8,128)}', space=vmem, size = 0x8000, scoped, tag = 'scratch operand']
  %s0 = inlined_call_operand.hbm [shape: f32[8,16,16], index: 0, kind: input, shape index: {}]
  %s1 = inlined_call_operand.vmem [shape: f32[32,16], index: 1, kind: input, shape index: {}]
  %s2 = inlined_call_operand.vmem [shape: f32[16,32], index: 2, kind: input, shape index: {}]
  %s3 = inlined_call_operand.hbm [shape: f32[8,32,32], index: 3, kind: output, shape index: {}]
  %s4 = sld [smem:[#allocation0]]
  $region49: #{tpu_custom_call.1} parent=0
    _
  %s6 = ssub.s32 1, %s4
  %s7 = scalar_select 0, %s6, %s4
  $region1: #{tpu_custom_call.1} parent=0
    #allocation3 [shape = 'u8[65536]{0}', space=vmem, size = 0x10000, scoped, tag = 'input window, operand 0']
    #allocation4 [shape = 's32[2]{0}', space=sflag, size = 0x8, scoped, tag = 'scoped memory for tpu_custom_call.1']
    #allocation5 [shape = 's32[2]{0}', space=sflag, size = 0x8, scoped, tag = 'scoped memory for tpu_custom_call.1']
    #allocation6 [shape = 'u8[131072]{0}', space=vmem, size = 0x20000, scoped, tag = 'output window, operand 0']
    %8 = vsyncpa [#allocation4], 0
    %s9 = scalar_lea.sflag [#allocation4], 1
    %10 = vsyncpa %s9, 0
    %11 = vsyncpa [#allocation5], 0
    %s12 = scalar_lea.sflag [#allocation5], 1
    %13 = vsyncpa %s12, 0
    loop: start=0, step=1, limit=4
    $region2: #{tpu_custom_call.1} parent=1 // loop_pre_header
      _
    $region3: #{tpu_custom_call.1} parent=1 // loop_header
      %s15 = sphi 0, %s19
      %p16 = scmp.ge.s32.totalorder %s15, 4
      %s25 = sphi 0, %s27
      %s28 = sphi 0, %s25
      %s29 = sphi 0, %s28
      %s45 = sphi 0, %s29
      %s49 = sphi 0, %s49
      %s51 = sphi 0, %s49
      %s52 = sphi 0, %s51
      %s66 = sphi 0, %s52
      %s70 = sphi 0, %s70
      %s72 = sphi 0, %s70
      %s73 = sphi 0, %s72
      %s87 = sphi 0, %s73
      %s93 = sphi 0, %s95
      %s96 = sphi 0, %s93
      %s97 = sphi 0, %s96
      %s113 = sphi 0, %s97
    $region4: #{tpu_custom_call.1} parent=1 // loop_header_branch
      %18 = sbr.rel (%p16) target = $region8
    $region5: #{tpu_custom_call.1} parent=1 // loop_body
      %s20 = ssub.s32 %s15, 1
      %s21 = ssub.s32 %s15, 2
      %s22 = sadd.s32 %s15, 1
      %s23 = ssub.s32 %s15, %s22
      %p24 = scmp.eq.s32.totalorder %s23, 0
      %s26 = sadd.s32 %s25, 1
      %s27 = scalar_select %p24, %s25, %s26
      %p30 = pneg %p24
      %p31 = scmp.eq.s32.totalorder %s15, 1
      %p32 = por %p30, %p31
      %p33 = scmp.ne.s32.totalorder %s25, %s28
      %p34 = scmp.eq.s32.totalorder %s15, 0
      %p35 = por %p33, %p34
      %p36 = scmp.ne.s32.totalorder %s25, %s28
      %p37 = scmp.eq.s32.totalorder %s20, 1
      %p38 = por %p36, %p37
      %p39 = scmp.ne.s32.totalorder %s28, %s29
      %p40 = scmp.eq.s32.totalorder %s20, 0
      %p41 = por %p39, %p40
      %p42 = scmp.ne.s32.totalorder %s28, %s29
      %p43 = scmp.eq.s32.totalorder %s21, 1
      %p44 = por %p42, %p43
      %p46 = scmp.ne.s32.totalorder %s29, %s45
      %p47 = scmp.eq.s32.totalorder %s21, 0
      %p48 = por %p46, %p47
      %s50 = sadd.s32 %s49, 1
      %p53 = scmp.eq.s32.totalorder %s15, 1
      %p54 = scmp.ne.s32.totalorder %s49, %s51
      %p55 = scmp.eq.s32.totalorder %s15, 0
      %p56 = por %p54, %p55
      %p57 = scmp.ne.s32.totalorder %s49, %s51
      %p58 = scmp.eq.s32.totalorder %s20, 1
      %p59 = por %p57, %p58
      %p60 = scmp.ne.s32.totalorder %s51, %s52
      %p61 = scmp.eq.s32.totalorder %s20, 0
      %p62 = por %p60, %p61
      %p63 = scmp.ne.s32.totalorder %s51, %s52
      %p64 = scmp.eq.s32.totalorder %s21, 1
      %p65 = por %p63, %p64
      %p67 = scmp.ne.s32.totalorder %s52, %s66
      %p68 = scmp.eq.s32.totalorder %s21, 0
      %p69 = por %p67, %p68
      %s71 = sadd.s32 %s70, 1
      %p74 = scmp.eq.s32.totalorder %s15, 1
      %p75 = scmp.ne.s32.totalorder %s70, %s72
      %p76 = scmp.eq.s32.totalorder %s15, 0
      %p77 = por %p75, %p76
      %p78 = scmp.ne.s32.totalorder %s70, %s72
      %p79 = scmp.eq.s32.totalorder %s20, 1
      %p80 = por %p78, %p79
      %p81 = scmp.ne.s32.totalorder %s72, %s73
      %p82 = scmp.eq.s32.totalorder %s20, 0
      %p83 = por %p81, %p82
      %p84 = scmp.ne.s32.totalorder %s72, %s73
      %p85 = scmp.eq.s32.totalorder %s21, 1
      %p86 = por %p84, %p85
      %p88 = scmp.ne.s32.totalorder %s73, %s87
      %p89 = scmp.eq.s32.totalorder %s21, 0
      %p90 = por %p88, %p89
      %s91 = ssub.s32 %s15, %s22
      %p92 = scmp.eq.s32.totalorder %s91, 0
      %s94 = sadd.s32 %s93, 1
      %s95 = scalar_select %p92, %s93, %s94
      %p98 = pneg %p92
      %p99 = scmp.eq.s32.totalorder %s15, 1
      %p100 = por %p98, %p99
      %p101 = scmp.ne.s32.totalorder %s93, %s96
      %p102 = scmp.eq.s32.totalorder %s15, 0
      %p103 = por %p101, %p102
      %p104 = scmp.ne.s32.totalorder %s93, %s96
      %p105 = scmp.eq.s32.totalorder %s20, 1
      %p106 = por %p104, %p105
      %p107 = scmp.ne.s32.totalorder %s96, %s97
      %p108 = scmp.eq.s32.totalorder %s20, 0
      %p109 = por %p107, %p108
      %p110 = scmp.ne.s32.totalorder %s96, %s97
      %p111 = scmp.eq.s32.totalorder %s21, 1
      %p112 = por %p110, %p111
      %p114 = scmp.ne.s32.totalorder %s97, %s113
      %p115 = scmp.eq.s32.totalorder %s21, 0
      %p116 = por %p114, %p115
      %p117 = scmp.le.s32.totalorder 1, %s15
      %p118 = scmp.lt.s32.totalorder %s15, 3
      %p119 = pnand %p117, %p118
      %p120 = pneg %p119
      // Predicated region
      $region9: #{tpu_custom_call.1} parent=5 // pred_check
        _
      $region10: #{tpu_custom_call.1} parent=5 // pred_check_branch
        %122 = sbr.rel (%p119) target = $region12
      $region11: #{tpu_custom_call.1} parent=5 // pred_region
        %s123 = ssub.s32 %s15, 1
        // Predicated region
        $region13: #{tpu_custom_call.1} parent=11 // pred_check
          %p124 = pneg %p62
        $region14: #{tpu_custom_call.1} parent=11 // pred_check_branch
          %126 = sbr.rel (%p124) target = $region16
        $region15: #{tpu_custom_call.1} parent=11 // pred_region
          _
        $region16: #{tpu_custom_call.1} parent=11 // pred_fallthru
          _
        // Predicated region
        $region17: #{tpu_custom_call.1} parent=11 // pred_check
          %p127 = pneg %p83
        $region18: #{tpu_custom_call.1} parent=11 // pred_check_branch
          %129 = sbr.rel (%p127) target = $region20
        $region19: #{tpu_custom_call.1} parent=11 // pred_region
          _
        $region20: #{tpu_custom_call.1} parent=11 // pred_fallthru
          _
      $region12: #{tpu_custom_call.1} parent=5 // pred_fallthru
        _
      %p130 = scmp.lt.s32.totalorder %s15, 2
      // Predicated region
      $region21: #{tpu_custom_call.1} parent=5 // pred_check
        %p131 = pneg %p130
      $region22: #{tpu_custom_call.1} parent=5 // pred_check_branch
        %133 = sbr.rel (%p131) target = $region24
      $region23: #{tpu_custom_call.1} parent=5 // pred_region
        // Predicated region
        $region25: #{tpu_custom_call.1} parent=23 // pred_check
          %p134 = pneg %p35
        $region26: #{tpu_custom_call.1} parent=23 // pred_check_branch
          %136 = sbr.rel (%p134) target = $region28
        $region27: #{tpu_custom_call.1} parent=23 // pred_region
          %s137 = sand.u32 %s25, 1
          %s138 = scalar_lea.sflag [#allocation4], %s137
          %s139 = sand.u32 %s25, 1
          %s140 = smul.addr %s139, 64
          %s141 = scalar_lea.vmem [#allocation3], %s140
          %s142 = smul.u32 4, %s15
          %s144 = ssub.s32 1024, 1024
          %145 = vsyncadd %s138, %s144
          %s146 = smul.addr %s142, 2
          %s147 = smul.addr %s146, 128
          %s148 = scalar_lea.hbm %s0, %s147
          %s149 = sshll.u32 %s141, 4
          %s150 = int_to_ptr.vmem [resolvable:$true] %s149
          %155 = dma.hbm_to_vmem [thread:$0]  %s148, 1024, %s150, %s138, 128, 128, 8
        $region28: #{tpu_custom_call.1} parent=23 // pred_fallthru
          _
      $region24: #{tpu_custom_call.1} parent=5 // pred_fallthru
        _
      %p156 = scmp.le.s32.totalorder 1, %s15
      %p157 = scmp.lt.s32.totalorder %s15, 3
      %p158 = pnand %p156, %p157
      %p159 = pneg %p158
      // Predicated region
      $region29: #{tpu_custom_call.1} parent=5 // pred_check
        _
      $region30: #{tpu_custom_call.1} parent=5 // pred_check_branch
        %161 = sbr.rel (%p158) target = $region32
      $region31: #{tpu_custom_call.1} parent=5 // pred_region
        %s162 = ssub.s32 %s15, 1
        %s163 = sand.u32 %s28, 1
        %s164 = scalar_lea.sflag [#allocation4], %s163
        %s165 = sand.u32 %s28, 1
        %s166 = smul.addr %s165, 64
        %s167 = scalar_lea.vmem [#allocation3], %s166
        // Predicated region
        $region33: #{tpu_custom_call.1} parent=31 // pred_check
          %p168 = pneg %p41
        $region34: #{tpu_custom_call.1} parent=31 // pred_check_branch
          %170 = sbr.rel (%p168) target = $region36
        $region35: #{tpu_custom_call.1} parent=31 // pred_region
          %171 = dma.done %s164, 1024
        $region36: #{tpu_custom_call.1} parent=31 // pred_fallthru
          _
        %s172 = sand.u32 %s28, 1
        %s173 = scalar_lea.sflag [#allocation4], %s172
        %s174 = sand.u32 %s28, 1
        %s175 = smul.addr %s174, 64
        %s176 = scalar_lea.vmem [#allocation3], %s175
        %p177 = pneg %p41
        %p178 = pneg %p38
        %p179 = pneg %p62
        %p180 = pneg %p59
        %p181 = pneg %p83
        %p182 = pneg %p80
        %p183 = pneg %p109
        %p184 = pneg %p106
        %s185 = sand.u32 %s96, 1
        %s186 = scalar_lea.sflag [#allocation5], %s185
        %s187 = sand.u32 %s96, 1
        %s188 = smul.addr %s187, 128
        %s189 = scalar_lea.vmem [#allocation6], %s188
        %s190 = smul.u32 4, %s20
        %s191 = smul.u32 4, %s20
        %v192 = vld [vmem:[%s167] sm:$0xff]
        %v193 = vld [vmem:[%s167 + $0x8] sm:$0xff]
        %v194 = vld [vmem:[%s167 + $0x10] sm:$0xff]
        %v195 = vld [vmem:[%s167 + $0x18] sm:$0xff]
        %v196 = vld [vmem:[%s167 + $0x20] sm:$0xff]
        %v197 = vld [vmem:[%s167 + $0x28] sm:$0xff]
        %v198 = vld [vmem:[%s167 + $0x30] sm:$0xff]
        %v199 = vld [vmem:[%s167 + $0x38] sm:$0xff]
        %v200 = vld [vmem:[%s2] sm:$0xff]
        %v201 = vld [vmem:[%s2 + $0x8] sm:$0xff]
        %vm202 = vcmask 130048
        %v204 = vsel %vm202, %v192, 0
        %v207 = vsel %vm202, %v193, 0
        %v210 = vsel %vm202, %v194, 0
        %v213 = vsel %vm202, %v195, 0
        %v216 = vsel %vm202, %v196, 0
        %v219 = vsel %vm202, %v197, 0
        %v222 = vsel %vm202, %v198, 0
        %v225 = vsel %vm202, %v199, 0
        %227 = vmatprep.subr.mxu0 0.0
        %228 = vmatpush1.msra.mxu0 %v200
        %229 = vmatprep.subr.mxu0 0.0
        %230 = vmatpush1.msra.mxu0 %v201
        %231 = vmatprep.subr.mxu0 0.0
        %232 = vmatpush1.msra.mxu0 0.0
        %233 = vmatprep.subr.mxu0 0.0
        %234 = vmatpush1.msra.mxu0 0.0
        %235 = vmatprep.subr.mxu0 0.0
        %236 = vmatpush1.msra.mxu0 0.0
        %237 = vmatprep.subr.mxu0 0.0
        %238 = vmatpush1.msra.mxu0 0.0
        %239 = vmatprep.subr.mxu0 0.0
        %240 = vmatpush1.msra.mxu0 0.0
        %241 = vmatprep.subr.mxu0 0.0
        %242 = vmatpush1.msra.mxu0 0.0
        %243 = vmatprep.subr.mxu0 0.0
        %244 = vmatpush1.msra.mxu0 0.0
        %245 = vmatprep.subr.mxu0 0.0
        %246 = vmatpush1.msra.mxu0 0.0
        %247 = vmatprep.subr.mxu0 0.0
        %248 = vmatpush1.msra.mxu0 0.0
        %249 = vmatprep.subr.mxu0 0.0
        %250 = vmatpush1.msra.mxu0 0.0
        %251 = vmatprep.subr.mxu0 0.0
        %252 = vmatpush1.msra.mxu0 0.0
        %253 = vmatprep.subr.mxu0 0.0
        %254 = vmatpush1.msra.mxu0 0.0
        %255 = vmatprep.subr.mxu0 0.0
        %256 = vmatpush1.msra.mxu0 0.0
        %257 = vmatprep.subr.mxu0 0.0
        %258 = vmatpush1.msra.mxu0 0.0
        %259 = vmatprep.subr.mxu0 0.0
        %260 = vmatpush1.msra.mxu0 0.0
        %261 = vmatprep.subr.mxu0 0.0
        %262 = vmatpush1.msra.mxu0 0.0
        %263 = vmatprep.subr.mxu0 0.0
        %264 = vmatpush1.msra.mxu0 0.0
        %265 = vmatprep.subr.mxu0 0.0
        %266 = vmatpush1.msra.mxu0 0.0
        %267 = vmatprep.subr.mxu0 0.0
        %268 = vmatpush1.msra.mxu0 0.0
        %269 = vmatprep.subr.mxu0 0.0
        %270 = vmatpush1.msra.mxu0 0.0
        %271 = vmatprep.subr.mxu0 0.0
        %272 = vmatpush1.msra.mxu0 0.0
        %273 = vmatprep.subr.mxu0 0.0
        %274 = vmatpush1.msra.mxu0 0.0
        %275 = vmatprep.subr.mxu0 0.0
        %276 = vmatpush1.msra.mxu0 0.0
        %277 = vmatprep.subr.mxu0 0.0
        %278 = vmatpush1.msra.mxu0 0.0
        %279 = vmatprep.subr.mxu0 0.0
        %280 = vmatpush1.msra.mxu0 0.0
        %281 = vmatprep.subr.mxu0 0.0
        %282 = vmatpush1.msra.mxu0 0.0
        %283 = vmatprep.subr.mxu0 0.0
        %284 = vmatpush1.msra.mxu0 0.0
        %285 = vmatprep.subr.mxu0 0.0
        %286 = vmatpush1.msra.mxu0 0.0
        %287 = vmatprep.subr.mxu0 0.0
        %288 = vmatpush1.msra.mxu0 0.0
        %289 = vmatprep.subr.mxu0 0.0
        %290 = vmatpush1.msra.mxu0 0.0
        %291 = vmatprep.mubr.f32.mxu0 0.0
        %292 = vmatmul.mubr.f32.gmra.mrb[0].mxu0 %v204
        %v293 = vpop.f32.mrb[0].mxu0
        %v294 = vadd.f32 0.0, %v293
        %v295 = vpop.f32.mrb[0].mxu0
        %296 = vmatprep.mubr.f32.mxu0 0.0
        %297 = vmatmul.mubr.f32.gmra.mrb[0].mxu0 %v207
        %v298 = vpop.f32.mrb[0].mxu0
        %v299 = vadd.f32 0.0, %v298
        %v300 = vpop.f32.mrb[0].mxu0
        %301 = vmatprep.mubr.f32.mxu0 0.0
        %302 = vmatmul.mubr.f32.gmra.mrb[0].mxu0 %v210
        %v303 = vpop.f32.mrb[0].mxu0
        %v304 = vadd.f32 0.0, %v303
        %v305 = vpop.f32.mrb[0].mxu0
        %306 = vmatprep.mubr.f32.mxu0 0.0
        %307 = vmatmul.mubr.f32.gmra.mrb[0].mxu0 %v213
        %v308 = vpop.f32.mrb[0].mxu0
        %v309 = vadd.f32 0.0, %v308
        %v310 = vpop.f32.mrb[0].mxu0
        %311 = vmatprep.mubr.f32.mxu0 0.0
        %312 = vmatmul.mubr.f32.gmra.mrb[0].mxu0 %v216
        %v313 = vpop.f32.mrb[0].mxu0
        %v314 = vadd.f32 0.0, %v313
        %v315 = vpop.f32.mrb[0].mxu0
        %316 = vmatprep.mubr.f32.mxu0 0.0
        %317 = vmatmul.mubr.f32.gmra.mrb[0].mxu0 %v219
        %v318 = vpop.f32.mrb[0].mxu0
        %v319 = vadd.f32 0.0, %v318
        %v320 = vpop.f32.mrb[0].mxu0
        %321 = vmatprep.mubr.f32.mxu0 0.0
        %322 = vmatmul.mubr.f32.gmra.mrb[0].mxu0 %v222
        %v323 = vpop.f32.mrb[0].mxu0
        %v324 = vadd.f32 0.0, %v323
        %v325 = vpop.f32.mrb[0].mxu0
        %326 = vmatprep.mubr.f32.mxu0 0.0
        %327 = vmatmul.mubr.f32.gmra.mrb[0].mxu0 %v225
        %v328 = vpop.f32.mrb[0].mxu0
        %v329 = vadd.f32 0.0, %v328
        %v330 = vpop.f32.mrb[0].mxu0
        %331 = vdwg.mxu0
        %vm332 = vcmask 261120
        %333 = vst.msk [vmem:[#allocation2] sm:$0xff] %vm332, %v294
        %334 = vst.msk [vmem:[#allocation2 + $0x8] sm:$0xff] %vm332, %v299
        %335 = vst.msk [vmem:[#allocation2 + $0x10] sm:$0xff] %vm332, %v304
        %336 = vst.msk [vmem:[#allocation2 + $0x18] sm:$0xff] %vm332, %v309
        %337 = vst.msk [vmem:[#allocation2 + $0x20] sm:$0xff] %vm332, %v314
        %338 = vst.msk [vmem:[#allocation2 + $0x28] sm:$0xff] %vm332, %v319
        %339 = vst.msk [vmem:[#allocation2 + $0x30] sm:$0xff] %vm332, %v324
        %340 = vst.msk [vmem:[#allocation2 + $0x38] sm:$0xff] %vm332, %v329
        %v341 = vld [vmem:[%s1] sm:$0xff]
        %v342 = vld [vmem:[%s1 + $0x8] sm:$0xff]
        %v343 = vld [vmem:[%s1 + $0x10] sm:$0xff]
        %v344 = vld [vmem:[%s1 + $0x18] sm:$0xff]
        %v345 = vld [vmem:[#allocation2] sm:$0xff]
        %v346 = vld [vmem:[#allocation2 + $0x8] sm:$0xff]
        %v348 = vsel %vm202, %v341, 0
        %v351 = vsel %vm202, %v342, 0
        %v354 = vsel %vm202, %v343, 0
        %v357 = vsel %vm202, %v344, 0
        %359 = vmatprep.subr.mxu0 0.0
        %360 = vmatpush1.msra.mxu0 %v345
        %361 = vmatprep.subr.mxu0 0.0
        %362 = vmatpush1.msra.mxu0 %v346
        %363 = vmatprep.subr.mxu0 0.0
        %364 = vmatpush1.msra.mxu0 0.0
        %365 = vmatprep.subr.mxu0 0.0
        %366 = vmatpush1.msra.mxu0 0.0
        %367 = vmatprep.subr.mxu0 0.0
        %368 = vmatpush1.msra.mxu0 0.0
        %369 = vmatprep.subr.mxu0 0.0
        %370 = vmatpush1.msra.mxu0 0.0
        %371 = vmatprep.subr.mxu0 0.0
        %372 = vmatpush1.msra.mxu0 0.0
        %373 = vmatprep.subr.mxu0 0.0
        %374 = vmatpush1.msra.mxu0 0.0
        %375 = vmatprep.subr.mxu0 0.0
        %376 = vmatpush1.msra.mxu0 0.0
        %377 = vmatprep.subr.mxu0 0.0
        %378 = vmatpush1.msra.mxu0 0.0
        %379 = vmatprep.subr.mxu0 0.0
        %380 = vmatpush1.msra.mxu0 0.0
        %381 = vmatprep.subr.mxu0 0.0
        %382 = vmatpush1.msra.mxu0 0.0
        %383 = vmatprep.subr.mxu0 0.0
        %384 = vmatpush1.msra.mxu0 0.0
        %385 = vmatprep.subr.mxu0 0.0
        %386 = vmatpush1.msra.mxu0 0.0
        %387 = vmatprep.subr.mxu0 0.0
        %388 = vmatpush1.msra.mxu0 0.0
        %389 = vmatprep.subr.mxu0 0.0
        %390 = vmatpush1.msra.mxu0 0.0
        %391 = vmatprep.subr.mxu0 0.0
        %392 = vmatpush1.msra.mxu0 0.0
        %393 = vmatprep.subr.mxu0 0.0
        %394 = vmatpush1.msra.mxu0 0.0
        %395 = vmatprep.subr.mxu0 0.0
        %396 = vmatpush1.msra.mxu0 0.0
        %397 = vmatprep.subr.mxu0 0.0
        %398 = vmatpush1.msra.mxu0 0.0
        %399 = vmatprep.subr.mxu0 0.0
        %400 = vmatpush1.msra.mxu0 0.0
        %401 = vmatprep.subr.mxu0 0.0
        %402 = vmatpush1.msra.mxu0 0.0
        %403 = vmatprep.subr.mxu0 0.0
        %404 = vmatpush1.msra.mxu0 0.0
        %405 = vmatprep.subr.mxu0 0.0
        %406 = vmatpush1.msra.mxu0 0.0
        %407 = vmatprep.subr.mxu0 0.0
        %408 = vmatpush1.msra.mxu0 0.0
        %409 = vmatprep.subr.mxu0 0.0
        %410 = vmatpush1.msra.mxu0 0.0
        %411 = vmatprep.subr.mxu0 0.0
        %412 = vmatpush1.msra.mxu0 0.0
        %413 = vmatprep.subr.mxu0 0.0
        %414 = vmatpush1.msra.mxu0 0.0
        %415 = vmatprep.subr.mxu0 0.0
        %416 = vmatpush1.msra.mxu0 0.0
        %417 = vmatprep.subr.mxu0 0.0
        %418 = vmatpush1.msra.mxu0 0.0
        %419 = vmatprep.subr.mxu0 0.0
        %420 = vmatpush1.msra.mxu0 0.0
        %421 = vmatprep.subr.mxu0 0.0
        %422 = vmatpush1.msra.mxu0 0.0
        %423 = vmatprep.mubr.f32.mxu0 0.0
        %424 = vmatmul.mubr.f32.gmra.mrb[0].mxu0 %v348
        %v425 = vpop.f32.mrb[0].mxu0
        %v426 = vadd.f32 0.0, %v425
        %v427 = vpop.f32.mrb[0].mxu0
        %428 = vmatprep.mubr.f32.mxu0 0.0
        %429 = vmatmul.mubr.f32.gmra.mrb[0].mxu0 %v351
        %v430 = vpop.f32.mrb[0].mxu0
        %v431 = vadd.f32 0.0, %v430
        %v432 = vpop.f32.mrb[0].mxu0
        %433 = vmatprep.mubr.f32.mxu0 0.0
        %434 = vmatmul.mubr.f32.gmra.mrb[0].mxu0 %v354
        %v435 = vpop.f32.mrb[0].mxu0
        %v436 = vadd.f32 0.0, %v435
        %v437 = vpop.f32.mrb[0].mxu0
        %438 = vmatprep.mubr.f32.mxu0 0.0
        %439 = vmatmul.mubr.f32.gmra.mrb[0].mxu0 %v357
        %v440 = vpop.f32.mrb[0].mxu0
        %v441 = vadd.f32 0.0, %v440
        %v442 = vpop.f32.mrb[0].mxu0
        %443 = vdwg.mxu0
        %444 = vst.msk [vmem:[%s189] sm:$0xff] %vm332, %v426
        %445 = vst.msk [vmem:[%s189 + $0x8] sm:$0xff] %vm332, %v431
        %446 = vst.msk [vmem:[%s189 + $0x10] sm:$0xff] %vm332, %v436
        %447 = vst.msk [vmem:[%s189 + $0x18] sm:$0xff] %vm332, %v441
        %s448 = scalar_lea.vmem [#allocation2], 16
        %v449 = vld [vmem:[%s448] sm:$0xff]
        %v450 = vld [vmem:[%s448 + $0x8] sm:$0xff]
        %451 = vmatprep.subr.mxu0 0.0
        %452 = vmatpush1.msra.mxu0 %v449
        %453 = vmatprep.subr.mxu0 0.0
        %454 = vmatpush1.msra.mxu0 %v450
        %455 = vmatprep.subr.mxu0 0.0
        %456 = vmatpush1.msra.mxu0 0.0
        %457 = vmatprep.subr.mxu0 0.0
        %458 = vmatpush1.msra.mxu0 0.0
        %459 = vmatprep.subr.mxu0 0.0
        %460 = vmatpush1.msra.mxu0 0.0
        %461 = vmatprep.subr.mxu0 0.0
        %462 = vmatpush1.msra.mxu0 0.0
        %463 = vmatprep.subr.mxu0 0.0
        %464 = vmatpush1.msra.mxu0 0.0
        %465 = vmatprep.subr.mxu0 0.0
        %466 = vmatpush1.msra.mxu0 0.0
        %467 = vmatprep.subr.mxu0 0.0
        %468 = vmatpush1.msra.mxu0 0.0
        %469 = vmatprep.subr.mxu0 0.0
        %470 = vmatpush1.msra.mxu0 0.0
        %471 = vmatprep.subr.mxu0 0.0
        %472 = vmatpush1.msra.mxu0 0.0
        %473 = vmatprep.subr.mxu0 0.0
        %474 = vmatpush1.msra.mxu0 0.0
        %475 = vmatprep.subr.mxu0 0.0
        %476 = vmatpush1.msra.mxu0 0.0
        %477 = vmatprep.subr.mxu0 0.0
        %478 = vmatpush1.msra.mxu0 0.0
        %479 = vmatprep.subr.mxu0 0.0
        %480 = vmatpush1.msra.mxu0 0.0
        %481 = vmatprep.subr.mxu0 0.0
        %482 = vmatpush1.msra.mxu0 0.0
        %483 = vmatprep.subr.mxu0 0.0
        %484 = vmatpush1.msra.mxu0 0.0
        %485 = vmatprep.subr.mxu0 0.0
        %486 = vmatpush1.msra.mxu0 0.0
        %487 = vmatprep.subr.mxu0 0.0
        %488 = vmatpush1.msra.mxu0 0.0
        %489 = vmatprep.subr.mxu0 0.0
        %490 = vmatpush1.msra.mxu0 0.0
        %491 = vmatprep.subr.mxu0 0.0
        %492 = vmatpush1.msra.mxu0 0.0
        %493 = vmatprep.subr.mxu0 0.0
        %494 = vmatpush1.msra.mxu0 0.0
        %495 = vmatprep.subr.mxu0 0.0
        %496 = vmatpush1.msra.mxu0 0.0
        %497 = vmatprep.subr.mxu0 0.0
        %498 = vmatpush1.msra.mxu0 0.0
        %499 = vmatprep.subr.mxu0 0.0
        %500 = vmatpush1.msra.mxu0 0.0
        %501 = vmatprep.subr.mxu0 0.0
        %502 = vmatpush1.msra.mxu0 0.0
        %503 = vmatprep.subr.mxu0 0.0
        %504 = vmatpush1.msra.mxu0 0.0
        %505 = vmatprep.subr.mxu0 0.0
        %506 = vmatpush1.msra.mxu0 0.0
        %507 = vmatprep.subr.mxu0 0.0
        %508 = vmatpush1.msra.mxu0 0.0
        %509 = vmatprep.subr.mxu0 0.0
        %510 = vmatpush1.msra.mxu0 0.0
        %511 = vmatprep.subr.mxu0 0.0
        %512 = vmatpush1.msra.mxu0 0.0
        %513 = vmatprep.subr.mxu0 0.0
        %514 = vmatpush1.msra.mxu0 0.0
        %515 = vmatprep.mubr.f32.mxu0 0.0
        %516 = vmatmul.mubr.f32.gmra.mrb[0].mxu0 %v348
        %v517 = vpop.f32.mrb[0].mxu0
        %v518 = vadd.f32 0.0, %v517
        %v519 = vpop.f32.mrb[0].mxu0
        %520 = vmatprep.mubr.f32.mxu0 0.0
        %521 = vmatmul.mubr.f32.gmra.mrb[0].mxu0 %v351
        %v522 = vpop.f32.mrb[0].mxu0
        %v523 = vadd.f32 0.0, %v522
        %v524 = vpop.f32.mrb[0].mxu0
        %525 = vmatprep.mubr.f32.mxu0 0.0
        %526 = vmatmul.mubr.f32.gmra.mrb[0].mxu0 %v354
        %v527 = vpop.f32.mrb[0].mxu0
        %v528 = vadd.f32 0.0, %v527
        %v529 = vpop.f32.mrb[0].mxu0
        %530 = vmatprep.mubr.f32.mxu0 0.0
        %531 = vmatmul.mubr.f32.gmra.mrb[0].mxu0 %v357
        %v532 = vpop.f32.mrb[0].mxu0
        %v533 = vadd.f32 0.0, %v532
        %v534 = vpop.f32.mrb[0].mxu0
        %535 = vdwg.mxu0
        %s536 = scalar_lea.vmem %s189, 32 [#allocation6]
        %537 = vst.msk [vmem:[%s536] sm:$0xff] %vm332, %v518
        %538 = vst.msk [vmem:[%s536 + $0x8] sm:$0xff] %vm332, %v523
        %539 = vst.msk [vmem:[%s536 + $0x10] sm:$0xff] %vm332, %v528
        %540 = vst.msk [vmem:[%s536 + $0x18] sm:$0xff] %vm332, %v533
        %s541 = scalar_lea.vmem [#allocation2], 32
        %v542 = vld [vmem:[%s541] sm:$0xff]
        %v543 = vld [vmem:[%s541 + $0x8] sm:$0xff]
        %544 = vmatprep.subr.mxu0 0.0
        %545 = vmatpush1.msra.mxu0 %v542
        %546 = vmatprep.subr.mxu0 0.0
        %547 = vmatpush1.msra.mxu0 %v543
        %548 = vmatprep.subr.mxu0 0.0
        %549 = vmatpush1.msra.mxu0 0.0
        %550 = vmatprep.subr.mxu0 0.0
        %551 = vmatpush1.msra.mxu0 0.0
        %552 = vmatprep.subr.mxu0 0.0
        %553 = vmatpush1.msra.mxu0 0.0
        %554 = vmatprep.subr.mxu0 0.0
        %555 = vmatpush1.msra.mxu0 0.0
        %556 = vmatprep.subr.mxu0 0.0
        %557 = vmatpush1.msra.mxu0 0.0
        %558 = vmatprep.subr.mxu0 0.0
        %559 = vmatpush1.msra.mxu0 0.0
        %560 = vmatprep.subr.mxu0 0.0
        %561 = vmatpush1.msra.mxu0 0.0
        %562 = vmatprep.subr.mxu0 0.0
        %563 = vmatpush1.msra.mxu0 0.0
        %564 = vmatprep.subr.mxu0 0.0
        %565 = vmatpush1.msra.mxu0 0.0
        %566 = vmatprep.subr.mxu0 0.0
        %567 = vmatpush1.msra.mxu0 0.0
        %568 = vmatprep.subr.mxu0 0.0
        %569 = vmatpush1.msra.mxu0 0.0
        %570 = vmatprep.subr.mxu0 0.0
        %571 = vmatpush1.msra.mxu0 0.0
        %572 = vmatprep.subr.mxu0 0.0
        %573 = vmatpush1.msra.mxu0 0.0
        %574 = vmatprep.subr.mxu0 0.0
        %575 = vmatpush1.msra.mxu0 0.0
        %576 = vmatprep.subr.mxu0 0.0
        %577 = vmatpush1.msra.mxu0 0.0
        %578 = vmatprep.subr.mxu0 0.0
        %579 = vmatpush1.msra.mxu0 0.0
        %580 = vmatprep.subr.mxu0 0.0
        %581 = vmatpush1.msra.mxu0 0.0
        %582 = vmatprep.subr.mxu0 0.0
        %583 = vmatpush1.msra.mxu0 0.0
        %584 = vmatprep.subr.mxu0 0.0
        %585 = vmatpush1.msra.mxu0 0.0
        %586 = vmatprep.subr.mxu0 0.0
        %587 = vmatpush1.msra.mxu0 0.0
        %588 = vmatprep.subr.mxu0 0.0
        %589 = vmatpush1.msra.mxu0 0.0
        %590 = vmatprep.subr.mxu0 0.0
        %591 = vmatpush1.msra.mxu0 0.0
        %592 = vmatprep.subr.mxu0 0.0
        %593 = vmatpush1.msra.mxu0 0.0
        %594 = vmatprep.subr.mxu0 0.0
        %595 = vmatpush1.msra.mxu0 0.0
        %596 = vmatprep.subr.mxu0 0.0
        %597 = vmatpush1.msra.mxu0 0.0
        %598 = vmatprep.subr.mxu0 0.0
        %599 = vmatpush1.msra.mxu0 0.0
        %600 = vmatprep.subr.mxu0 0.0
        %601 = vmatpush1.msra.mxu0 0.0
        %602 = vmatprep.subr.mxu0 0.0
        %603 = vmatpush1.msra.mxu0 0.0
        %604 = vmatprep.subr.mxu0 0.0
        %605 = vmatpush1.msra.mxu0 0.0
        %606 = vmatprep.subr.mxu0 0.0
        %607 = vmatpush1.msra.mxu0 0.0
        %608 = vmatprep.mubr.f32.mxu0 0.0
        %609 = vmatmul.mubr.f32.gmra.mrb[0].mxu0 %v348
        %v610 = vpop.f32.mrb[0].mxu0
        %v611 = vadd.f32 0.0, %v610
        %v612 = vpop.f32.mrb[0].mxu0
        %613 = vmatprep.mubr.f32.mxu0 0.0
        %614 = vmatmul.mubr.f32.gmra.mrb[0].mxu0 %v351
        %v615 = vpop.f32.mrb[0].mxu0
        %v616 = vadd.f32 0.0, %v615
        %v617 = vpop.f32.mrb[0].mxu0
        %618 = vmatprep.mubr.f32.mxu0 0.0
        %619 = vmatmul.mubr.f32.gmra.mrb[0].mxu0 %v354
        %v620 = vpop.f32.mrb[0].mxu0
        %v621 = vadd.f32 0.0, %v620
        %v622 = vpop.f32.mrb[0].mxu0
        %623 = vmatprep.mubr.f32.mxu0 0.0
        %624 = vmatmul.mubr.f32.gmra.mrb[0].mxu0 %v357
        %v625 = vpop.f32.mrb[0].mxu0
        %v626 = vadd.f32 0.0, %v625
        %v627 = vpop.f32.mrb[0].mxu0
        %628 = vdwg.mxu0
        %s629 = scalar_lea.vmem %s189, 64 [#allocation6]
        %630 = vst.msk [vmem:[%s629] sm:$0xff] %vm332, %v611
        %631 = vst.msk [vmem:[%s629 + $0x8] sm:$0xff] %vm332, %v616
        %632 = vst.msk [vmem:[%s629 + $0x10] sm:$0xff] %vm332, %v621
        %633 = vst.msk [vmem:[%s629 + $0x18] sm:$0xff] %vm332, %v626
        %s634 = scalar_lea.vmem [#allocation2], 48
        %v635 = vld [vmem:[%s634] sm:$0xff]
        %v636 = vld [vmem:[%s634 + $0x8] sm:$0xff]
        %637 = vmatprep.subr.mxu0 0.0
        %638 = vmatpush1.msra.mxu0 %v635
        %639 = vmatprep.subr.mxu0 0.0
        %640 = vmatpush1.msra.mxu0 %v636
        %641 = vmatprep.subr.mxu0 0.0
        %642 = vmatpush1.msra.mxu0 0.0
        %643 = vmatprep.subr.mxu0 0.0
        %644 = vmatpush1.msra.mxu0 0.0
        %645 = vmatprep.subr.mxu0 0.0
        %646 = vmatpush1.msra.mxu0 0.0
        %647 = vmatprep.subr.mxu0 0.0
        %648 = vmatpush1.msra.mxu0 0.0
        %649 = vmatprep.subr.mxu0 0.0
        %650 = vmatpush1.msra.mxu0 0.0
        %651 = vmatprep.subr.mxu0 0.0
        %652 = vmatpush1.msra.mxu0 0.0
        %653 = vmatprep.subr.mxu0 0.0
        %654 = vmatpush1.msra.mxu0 0.0
        %655 = vmatprep.subr.mxu0 0.0
        %656 = vmatpush1.msra.mxu0 0.0
        %657 = vmatprep.subr.mxu0 0.0
        %658 = vmatpush1.msra.mxu0 0.0
        %659 = vmatprep.subr.mxu0 0.0
        %660 = vmatpush1.msra.mxu0 0.0
        %661 = vmatprep.subr.mxu0 0.0
        %662 = vmatpush1.msra.mxu0 0.0
        %663 = vmatprep.subr.mxu0 0.0
        %664 = vmatpush1.msra.mxu0 0.0
        %665 = vmatprep.subr.mxu0 0.0
        %666 = vmatpush1.msra.mxu0 0.0
        %667 = vmatprep.subr.mxu0 0.0
        %668 = vmatpush1.msra.mxu0 0.0
        %669 = vmatprep.subr.mxu0 0.0
        %670 = vmatpush1.msra.mxu0 0.0
        %671 = vmatprep.subr.mxu0 0.0
        %672 = vmatpush1.msra.mxu0 0.0
        %673 = vmatprep.subr.mxu0 0.0
        %674 = vmatpush1.msra.mxu0 0.0
        %675 = vmatprep.subr.mxu0 0.0
        %676 = vmatpush1.msra.mxu0 0.0
        %677 = vmatprep.subr.mxu0 0.0
        %678 = vmatpush1.msra.mxu0 0.0
        %679 = vmatprep.subr.mxu0 0.0
        %680 = vmatpush1.msra.mxu0 0.0
        %681 = vmatprep.subr.mxu0 0.0
        %682 = vmatpush1.msra.mxu0 0.0
        %683 = vmatprep.subr.mxu0 0.0
        %684 = vmatpush1.msra.mxu0 0.0
        %685 = vmatprep.subr.mxu0 0.0
        %686 = vmatpush1.msra.mxu0 0.0
        %687 = vmatprep.subr.mxu0 0.0
        %688 = vmatpush1.msra.mxu0 0.0
        %689 = vmatprep.subr.mxu0 0.0
        %690 = vmatpush1.msra.mxu0 0.0
        %691 = vmatprep.subr.mxu0 0.0
        %692 = vmatpush1.msra.mxu0 0.0
        %693 = vmatprep.subr.mxu0 0.0
        %694 = vmatpush1.msra.mxu0 0.0
        %695 = vmatprep.subr.mxu0 0.0
        %696 = vmatpush1.msra.mxu0 0.0
        %697 = vmatprep.subr.mxu0 0.0
        %698 = vmatpush1.msra.mxu0 0.0
        %699 = vmatprep.subr.mxu0 0.0
        %700 = vmatpush1.msra.mxu0 0.0
        %701 = vmatprep.mubr.f32.mxu0 0.0
        %702 = vmatmul.mubr.f32.gmra.mrb[0].mxu0 %v348
        %v703 = vpop.f32.mrb[0].mxu0
        %v704 = vadd.f32 0.0, %v703
        %v705 = vpop.f32.mrb[0].mxu0
        %706 = vmatprep.mubr.f32.mxu0 0.0
        %707 = vmatmul.mubr.f32.gmra.mrb[0].mxu0 %v351
        %v708 = vpop.f32.mrb[0].mxu0
        %v709 = vadd.f32 0.0, %v708
        %v710 = vpop.f32.mrb[0].mxu0
        %711 = vmatprep.mubr.f32.mxu0 0.0
        %712 = vmatmul.mubr.f32.gmra.mrb[0].mxu0 %v354
        %v713 = vpop.f32.mrb[0].mxu0
        %v714 = vadd.f32 0.0, %v713
        %v715 = vpop.f32.mrb[0].mxu0
        %716 = vmatprep.mubr.f32.mxu0 0.0
        %717 = vmatmul.mubr.f32.gmra.mrb[0].mxu0 %v357
        %v718 = vpop.f32.mrb[0].mxu0
        %v719 = vadd.f32 0.0, %v718
        %v720 = vpop.f32.mrb[0].mxu0
        %721 = vdwg.mxu0
        %s722 = scalar_lea.vmem %s189, 96 [#allocation6]
        %723 = vst.msk [vmem:[%s722] sm:$0xff] %vm332, %v704
        %724 = vst.msk [vmem:[%s722 + $0x8] sm:$0xff] %vm332, %v709
        %725 = vst.msk [vmem:[%s722 + $0x10] sm:$0xff] %vm332, %v714
        %726 = vst.msk [vmem:[%s722 + $0x18] sm:$0xff] %vm332, %v719
        %s727 = sand.u32 %s96, 1
        %s728 = scalar_lea.sflag [#allocation5], %s727
        %s729 = sand.u32 %s96, 1
        %s730 = smul.addr %s729, 128
        %s731 = scalar_lea.vmem [#allocation6], %s730
        // Predicated region
        $region37: #{tpu_custom_call.1} parent=31 // pred_check
          %p732 = pneg %p106
        $region38: #{tpu_custom_call.1} parent=31 // pred_check_branch
          %734 = sbr.rel (%p732) target = $region40
        $region39: #{tpu_custom_call.1} parent=31 // pred_region
          %s735 = smul.u32 4, %s20
          %s737 = ssub.s32 2048, 2048
          %738 = vsyncadd %s728, %s737
          %s739 = smul.addr %s735, 4
          %s740 = smul.addr %s739, 128
          %s741 = scalar_lea.hbm %s3, %s740
          %s742 = sshll.u32 %s731, 4
          %s743 = int_to_ptr.vmem [resolvable:$true] %s742
          %748 = dma.vmem_to_hbm [thread:$0]  %s743, 2048, %s741, %s728, 128, 128, 8
        $region40: #{tpu_custom_call.1} parent=31 // pred_fallthru
          _
      $region32: #{tpu_custom_call.1} parent=5 // pred_fallthru
        _
      %p749 = scmp.le.s32.totalorder 2, %s15
      // Predicated region
      $region41: #{tpu_custom_call.1} parent=5 // pred_check
        %p750 = pneg %p749
      $region42: #{tpu_custom_call.1} parent=5 // pred_check_branch
        %752 = sbr.rel (%p750) target = $region44
      $region43: #{tpu_custom_call.1} parent=5 // pred_region
        %s753 = ssub.s32 %s15, 2
        // Predicated region
        $region45: #{tpu_custom_call.1} parent=43 // pred_check
          %p754 = pneg %p112
        $region46: #{tpu_custom_call.1} parent=43 // pred_check_branch
          %756 = sbr.rel (%p754) target = $region48
        $region47: #{tpu_custom_call.1} parent=43 // pred_region
          %s757 = sand.u32 %s97, 1
          %s758 = scalar_lea.sflag [#allocation5], %s757
          %s759 = sand.u32 %s97, 1
          %s760 = smul.addr %s759, 128
          %s761 = scalar_lea.vmem [#allocation6], %s760
          %762 = dma.done %s758, 2048
        $region48: #{tpu_custom_call.1} parent=43 // pred_fallthru
          _
      $region44: #{tpu_custom_call.1} parent=5 // pred_fallthru
        _
    $region6: #{tpu_custom_call.1} parent=1 // loop_footer
      %s19 = sadd.s32 1, %s15
    $region7: #{tpu_custom_call.1} parent=1 // loop_footer_branch
      %14 = sbr.rel target = $region3
    $region8: #{tpu_custom_call.1} parent=1 // loop_exit
      _
    %763 = vsyncpa [#allocation4], 1
    %s764 = scalar_lea.sflag [#allocation4], 1
    %765 = vsyncpa %s764, 1
    %766 = vsyncpa [#allocation5], 1
    %s767 = scalar_lea.sflag [#allocation5], 1
    %768 = vsyncpa %s767, 1

</llo_original>
